<compile_context>
chip_gen: v7x
topology: tpu7x:2x2x1
jax: 0.10.0
libtpu: 0.0.40
codegen_flags: <defaults>
</compile_context>

<pallas_src>
import functools

import jax
import jax.numpy as jnp
from jax import lax
from jax.experimental import pallas as pl
from jax.experimental.pallas import tpu as pltpu


_EPS = 1e-12  # F.normalize(p=2) default eps: v / max(||v||, eps)


def _infonce_kernel(x_ref, t_ref, neg_ref, out_ref, *, inv_temperature):
    """Writes -log softmax-probability of the positive, one value per row."""
    x = x_ref[...].astype(jnp.float32)      # (TB, D)
    t = t_ref[...].astype(jnp.float32)      # (TB, D)
    n = neg_ref[...].astype(jnp.float32)    # (TB, K, D)

    eps2 = jnp.float32(_EPS * _EPS)

    # 1 / max(||v||, eps) == rsqrt(max(||v||^2, eps^2))  (both args non-negative).
    x_inv = lax.rsqrt(jnp.maximum(jnp.sum(x * x, axis=-1, keepdims=True), eps2))  # (TB,1)
    t_inv = lax.rsqrt(jnp.maximum(jnp.sum(t * t, axis=-1, keepdims=True), eps2))  # (TB,1)
    xn = x * x_inv                                                                # (TB,D)

    # Positive cosine similarity: sum(xn * tn) == t_inv * sum(xn * t).
    pos_sim = jnp.sum(xn * t, axis=-1, keepdims=True) * t_inv                     # (TB,1)

    # Negatives: dot normalized anchor against raw negatives, then scale by
    # 1/||n|| per (row, k). Kept on VPU + lane reduce (an M=1 matvec would
    # waste the MXU and add result-FIFO latency for nothing).
    # TODO(synk): chunk K with an unrolled fori_loop if K*D ever grows enough to spill vregs.
    raw_dot = jnp.sum(xn[:, None, :] * n, axis=-1)                                # (TB,K)
    n_inv = lax.rsqrt(jnp.maximum(jnp.sum(n * n, axis=-1), eps2))                 # (TB,K)
    neg_sim = raw_dot * n_inv                                                     # (TB,K)

    inv_t = jnp.float32(inv_temperature)
    pos_l = pos_sim * inv_t                                                       # (TB,1)
    neg_l = neg_sim * inv_t                                                       # (TB,K)

    # Numerically stable log-softmax, positive column only.
    row_max = jnp.maximum(pos_l, jnp.max(neg_l, axis=-1, keepdims=True))          # (TB,1)
    denom = jnp.exp(pos_l - row_max) + jnp.sum(jnp.exp(neg_l - row_max),
                                               axis=-1, keepdims=True)            # (TB,1)
    log_p0 = (pos_l - row_max) - jnp.log(denom)                                   # (TB,1)

    out_ref[...] = -log_p0


def _choose_tile_b(batch, k, d, itemsize, neg_double_buffer_budget=16 * 1024 * 1024):
    """Pick TILE_B (multiple of 8, <=128) so double-buffered negatives fit the budget."""
    rows = max(8, neg_double_buffer_budget // max(1, 2 * k * d * itemsize))
    tile = max(8, min(128, (rows // 8) * 8))
    b_pad8 = ((batch + 7) // 8) * 8
    return min(tile, b_pad8)


def infonce_loss_pallas(input_vectors, target_vectors, neg_target_vectors,
                        temperature=0.05):
    """Pallas-TPU InfoNCE loss. Returns a float32 scalar."""
    assert input_vectors.ndim == 3 and input_vectors.shape[1] == 1
    assert target_vectors.ndim == 3 and target_vectors.shape[1] == 1
    assert neg_target_vectors.ndim == 3
    B, _, D = input_vectors.shape
    K = neg_target_vectors.shape[1]
    itemsize = max(jnp.dtype(input_vectors.dtype).itemsize,
                   jnp.dtype(neg_target_vectors.dtype).itemsize)

    tile_b = _choose_tile_b(B, K, D, itemsize)
    b_pad = ((B + tile_b - 1) // tile_b) * tile_b

    # Squeeze the singleton dim so batch rows pack densely into vreg sublanes.
    x2 = input_vectors.reshape(B, D)
    t2 = target_vectors.reshape(B, D)
    neg = neg_target_vectors

    if b_pad != B:
        pad = b_pad - B
        x2 = jnp.pad(x2, ((0, pad), (0, 0)))
        t2 = jnp.pad(t2, ((0, pad), (0, 0)))
        neg = jnp.pad(neg, ((0, pad), (0, 0), (0, 0)))

    grid = (b_pad // tile_b,)
    kernel = functools.partial(_infonce_kernel,
                               inv_temperature=1.0 / float(temperature))

    # Double-buffered tiles (negatives dominate) + tiny output; cap well under
    # v7x's 64 MiB physical VMEM.
    tile_bytes = (tile_b * K * D + 2 * tile_b * D) * itemsize + tile_b * 4
    vmem_limit = int(min(48 * 1024 * 1024, max(4 * 1024 * 1024, 3 * tile_bytes)))

    cost = pl.CostEstimate(
        flops=int(5 * B * K * D + 8 * B * D),
        transcendentals=int(B * (2 * K + 4)),
        bytes_accessed=int((2 * B * D + B * K * D) * itemsize + B * 4),
    )

    per_row = pl.pallas_call(
        kernel,
        out_shape=jax.ShapeDtypeStruct((b_pad, 1), jnp.float32),
        grid=grid,
        in_specs=[
            pl.BlockSpec((tile_b, D), lambda i: (i, 0)),
            pl.BlockSpec((tile_b, D), lambda i: (i, 0)),
            pl.BlockSpec((tile_b, K, D), lambda i: (i, 0, 0)),
        ],
        out_specs=pl.BlockSpec((tile_b, 1), lambda i: (i, 0)),
        compiler_params=pltpu.CompilerParams(
            dimension_semantics=("parallel",),
            vmem_limit_bytes=vmem_limit,
        ),
        cost_estimate=cost,
    )(x2, t2, neg)

    # Tiny final reduction stays in JAX so the batch grid axis remains parallel.
    return jnp.sum(per_row[:B, 0]) / jnp.float32(B)


def infonce_loss_ref(input_vectors, target_vectors, neg_target_vectors,
                     temperature=0.05):
    """Pure-JAX reference (mirrors the PyTorch forward exactly)."""
    def _norm(v):
        nrm = jnp.sqrt(jnp.sum(v * v, axis=-1, keepdims=True))
        return v / jnp.maximum(nrm, _EPS)

    xn = _norm(input_vectors.astype(jnp.float32))
    tn = _norm(target_vectors.astype(jnp.float32))
    nn_ = _norm(neg_target_vectors.astype(jnp.float32))
    pos = jnp.sum(xn * tn, axis=-1)                       # (B, 1)
    neg = jnp.sum(xn * nn_, axis=-1)                      # (B, K)
    logits = jnp.concatenate([pos, neg], axis=1) / temperature
    logits = logits - jnp.max(logits, axis=1, keepdims=True)
    exp_logits = jnp.exp(logits)
    softmax = exp_logits / jnp.sum(exp_logits, axis=1, keepdims=True)
    p0 = softmax[:, 0]
    return -jnp.mean(jnp.log(p0))


if __name__ == "__main__":
    # InfoNCELoss has no learnable parameters; temperature is a fixed hyperparam.
    temperature = 0.05

    B, K, D = 8, 7, 32
    key = jax.random.PRNGKey(0)
    k1, k2, k3 = jax.random.split(key, 3)
    input_vectors = jax.random.normal(k1, (B, 1, D), dtype=jnp.float32)
    target_vectors = jax.random.normal(k2, (B, 1, D), dtype=jnp.float32)
    neg_target_vectors = jax.random.normal(k3, (B, K, D), dtype=jnp.float32)

    loss = infonce_loss_pallas(input_vectors, target_vectors, neg_target_vectors,
                               temperature=temperature)
    loss = jax.block_until_ready(loss)

    loss_ref = infonce_loss_ref(input_vectors, target_vectors, neg_target_vectors,
                                temperature=temperature)
    assert jnp.allclose(loss, loss_ref, atol=1e-5, rtol=1e-5), (loss, loss_ref)

    print("KERNEL_OK")
</pallas_src>

<mosaic_0001>
module attributes {stable_mosaic.version = 11 : i64} {
  func.func @_infonce_kernel(%arg0: i32, %arg1: memref<8x32xf32, #tpu.memory_space<vmem>>, %arg2: memref<8x32xf32, #tpu.memory_space<vmem>>, %arg3: memref<8x7x32xf32, #tpu.memory_space<vmem>>, %arg4: memref<8x1xf32, #tpu.memory_space<vmem>>) attributes {dimension_semantics = [#tpu.dimension_semantics<parallel>], iteration_bounds = array<i64: 1>, scalar_prefetch = 0 : i64, scratch_operands = 0 : i64, tpu.core_type = #tpu.core_type<tc>, window_params = [{transform_indices = @transform_0, window_bounds = array<i64: 8, 32>}, {transform_indices = @transform_1, window_bounds = array<i64: 8, 32>}, {transform_indices = @transform_2, window_bounds = array<i64: 8, 7, 32>}, {transform_indices = @transform_3, window_bounds = array<i64: 8, 1>}]} {
    %c0 = arith.constant 0 : index
    %c0_0 = arith.constant 0 : index
    %0 = vector.load %arg1[%c0, %c0_0] : memref<8x32xf32, #tpu.memory_space<vmem>>, vector<8x32xf32>
    %c0_1 = arith.constant 0 : index
    %c0_2 = arith.constant 0 : index
    %1 = vector.load %arg2[%c0_1, %c0_2] : memref<8x32xf32, #tpu.memory_space<vmem>>, vector<8x32xf32>
    %c0_3 = arith.constant 0 : index
    %c0_4 = arith.constant 0 : index
    %c0_5 = arith.constant 0 : index
    %2 = vector.load %arg3[%c0_3, %c0_4, %c0_5] : memref<8x7x32xf32, #tpu.memory_space<vmem>>, vector<8x7x32xf32>
    %3 = arith.mulf %0, %0 : vector<8x32xf32>
    %cst = arith.constant dense<0.000000e+00> : vector<8xf32>
    %4 = vector.multi_reduction <add>, %3, %cst [1] : vector<8x32xf32> to vector<8xf32>
    %5 = vector.shape_cast %4 : vector<8xf32> to vector<8x1xf32>
    %cst_6 = arith.constant 1.000000e-24 : f32
    %6 = vector.broadcast %cst_6 : f32 to vector<8x1xf32>
    %7 = arith.maximumf %5, %6 : vector<8x1xf32>
    %8 = math.rsqrt %7 : vector<8x1xf32>
    %9 = arith.mulf %1, %1 : vector<8x32xf32>
    %cst_7 = arith.constant dense<0.000000e+00> : vector<8xf32>
    %10 = vector.multi_reduction <add>, %9, %cst_7 [1] : vector<8x32xf32> to vector<8xf32>
    %11 = vector.shape_cast %10 : vector<8xf32> to vector<8x1xf32>
    %cst_8 = arith.constant 1.000000e-24 : f32
    %12 = vector.broadcast %cst_8 : f32 to vector<8x1xf32>
    %13 = arith.maximumf %11, %12 : vector<8x1xf32>
    %14 = math.rsqrt %13 : vector<8x1xf32>
    %15 = vector.broadcast %8 : vector<8x1xf32> to vector<8x32xf32>
    %16 = arith.mulf %0, %15 : vector<8x32xf32>
    %17 = arith.mulf %16, %1 : vector<8x32xf32>
    %cst_9 = arith.constant dense<0.000000e+00> : vector<8xf32>
    %18 = vector.multi_reduction <add>, %17, %cst_9 [1] : vector<8x32xf32> to vector<8xf32>
    %19 = vector.shape_cast %18 : vector<8xf32> to vector<8x1xf32>
    %20 = arith.mulf %19, %14 : vector<8x1xf32>
    %21 = vector.shape_cast %16 : vector<8x32xf32> to vector<8x1x32xf32>
    %22 = vector.broadcast %21 : vector<8x1x32xf32> to vector<8x7x32xf32>
    %23 = arith.mulf %22, %2 : vector<8x7x32xf32>
    %cst_10 = arith.constant dense<0.000000e+00> : vector<8x7xf32>
    %24 = vector.multi_reduction <add>, %23, %cst_10 [2] : vector<8x7x32xf32> to vector<8x7xf32>
    %25 = arith.mulf %2, %2 : vector<8x7x32xf32>
    %cst_11 = arith.constant dense<0.000000e+00> : vector<8x7xf32>
    %26 = vector.multi_reduction <add>, %25, %cst_11 [2] : vector<8x7x32xf32> to vector<8x7xf32>
    %cst_12 = arith.constant 1.000000e-24 : f32
    %27 = vector.broadcast %cst_12 : f32 to vector<8x7xf32>
    %28 = arith.maximumf %26, %27 : vector<8x7xf32>
    %29 = math.rsqrt %28 : vector<8x7xf32>
    %30 = arith.mulf %24, %29 : vector<8x7xf32>
    %cst_13 = arith.constant 2.000000e+01 : f32
    %31 = vector.broadcast %cst_13 : f32 to vector<8x1xf32>
    %32 = arith.mulf %20, %31 : vector<8x1xf32>
    %cst_14 = arith.constant 2.000000e+01 : f32
    %33 = vector.broadcast %cst_14 : f32 to vector<8x7xf32>
    %34 = arith.mulf %30, %33 : vector<8x7xf32>
    %cst_15 = arith.constant dense<0xFF800000> : vector<8xf32>
    %35 = vector.multi_reduction <maximumf>, %34, %cst_15 [1] : vector<8x7xf32> to vector<8xf32>
    %36 = vector.shape_cast %35 : vector<8xf32> to vector<8x1xf32>
    %37 = arith.maximumf %32, %36 : vector<8x1xf32>
    %38 = arith.subf %32, %37 : vector<8x1xf32>
    %39 = math.exp %38 : vector<8x1xf32>
    %40 = vector.broadcast %37 : vector<8x1xf32> to vector<8x7xf32>
    %41 = arith.subf %34, %40 : vector<8x7xf32>
    %42 = math.exp %41 : vector<8x7xf32>
    %cst_16 = arith.constant dense<0.000000e+00> : vector<8xf32>
    %43 = vector.multi_reduction <add>, %42, %cst_16 [1] : vector<8x7xf32> to vector<8xf32>
    %44 = vector.shape_cast %43 : vector<8xf32> to vector<8x1xf32>
    %45 = arith.addf %39, %44 : vector<8x1xf32>
    %46 = arith.subf %32, %37 : vector<8x1xf32>
    %47 = math.log %45 : vector<8x1xf32>
    %48 = arith.subf %46, %47 : vector<8x1xf32>
    %cst_17 = arith.constant 0.000000e+00 : f32
    %49 = vector.broadcast %cst_17 : f32 to vector<8x1xf32>
    %50 = arith.subf %49, %48 : vector<8x1xf32>
    %c0_18 = arith.constant 0 : index
    %c0_19 = arith.constant 0 : index
    %51 = vector.load %arg4[%c0_18, %c0_19] : memref<8x1xf32, #tpu.memory_space<vmem>>, vector<8x1xf32>
    tpu.vector_store %arg4[%c0_18, %c0_19], %50 {strides = array<i32>} : memref<8x1xf32, #tpu.memory_space<vmem>>, vector<8x1xf32>,
    return
  }
  func.func @transform_0(%arg0: i32) -> (i32, i32) {
    %c0_i32 = arith.constant 0 : i32
    %c0_i32_0 = arith.constant 0 : i32
    return %arg0, %c0_i32 : i32, i32
  }
  func.func @transform_1(%arg0: i32) -> (i32, i32) {
    %c0_i32 = arith.constant 0 : i32
    %c0_i32_0 = arith.constant 0 : i32
    return %arg0, %c0_i32 : i32, i32
  }
  func.func @transform_2(%arg0: i32) -> (i32, i32, i32) {
    %c0_i32 = arith.constant 0 : i32
    %c0_i32_0 = arith.constant 0 : i32
    %c0_i32_1 = arith.constant 0 : i32
    return %arg0, %c0_i32, %c0_i32_0 : i32, i32, i32
  }
  func.func @transform_3(%arg0: i32) -> (i32, i32) {
    %c0_i32 = arith.constant 0 : i32
    %c0_i32_0 = arith.constant 0 : i32
    return %arg0, %c0_i32 : i32, i32
  }
}

</mosaic_0001>

<llo_original>
// kernel: tpu_custom_call.1
$region0: #{tpu_custom_call.1}
  #allocation0 [shape = 'u32[]', space=smem, size = 0x4, offset = 0x4, fixed_abs, tag = 'smem constant byte address 0x4 - core index']
  #allocation1 [shape = 'u32[144,128]{1,0:T(1,128)}', space=vmem, size = 0x12000, scoped, tag = 'internal scratch']
  %s0 = inlined_call_operand.vmem [shape: f32[8,32], index: 0, kind: input, shape index: {}]
  %s1 = inlined_call_operand.vmem [shape: f32[8,32], index: 1, kind: input, shape index: {}]
  %s2 = inlined_call_operand.vmem [shape: f32[8,7,32], index: 2, kind: input, shape index: {}]
  %s3 = inlined_call_operand.vmem [shape: f32[8,1], index: 3, kind: output, shape index: {}]
  %s4 = sld [smem:[#allocation0]]
  $region22: #{tpu_custom_call.1} parent=0
    _
  %s6 = ssub.s32 1, %s4
  %s7 = scalar_select 0, %s6, %s4
  // Predicated region
  $region2: #{tpu_custom_call.1} parent=0 // pred_check
    _
  $region3: #{tpu_custom_call.1} parent=0 // pred_check_branch
    %9 = sbr.rel (0) target = $region5
  $region4: #{tpu_custom_call.1} parent=0 // pred_region
    _
  $region5: #{tpu_custom_call.1} parent=0 // pred_fallthru
    _
  // Predicated region
  $region6: #{tpu_custom_call.1} parent=0 // pred_check
    _
  $region7: #{tpu_custom_call.1} parent=0 // pred_check_branch
    %11 = sbr.rel (0) target = $region9
  $region8: #{tpu_custom_call.1} parent=0 // pred_region
    _
  $region9: #{tpu_custom_call.1} parent=0 // pred_fallthru
    _
  // Predicated region
  $region10: #{tpu_custom_call.1} parent=0 // pred_check
    _
  $region11: #{tpu_custom_call.1} parent=0 // pred_check_branch
    %13 = sbr.rel (0) target = $region13
  $region12: #{tpu_custom_call.1} parent=0 // pred_region
    _
  $region13: #{tpu_custom_call.1} parent=0 // pred_fallthru
    _
  %v14 = vld [vmem:[%s0] sm:$0xff]
  %v15 = vld [vmem:[%s1] sm:$0xff]
  %v16 = vld [vmem:[%s2] sm:$0x7f]
  %v17 = vld [vmem:[%s2 + $0x8] sm:$0x7f]
  %v18 = vld [vmem:[%s2 + $0x10] sm:$0x7f]
  %v19 = vld [vmem:[%s2 + $0x18] sm:$0x7f]
  %v20 = vld [vmem:[%s2 + $0x20] sm:$0x7f]
  %v21 = vld [vmem:[%s2 + $0x28] sm:$0x7f]
  %v22 = vld [vmem:[%s2 + $0x30] sm:$0x7f]
  %v23 = vld [vmem:[%s2 + $0x38] sm:$0x7f]
  %v24 = vmul.f32 %v14, %v14
  %vm25 = vcmask 261120
  %v26 = vsel %vm25, %v24, 0.0
  %27 = vadd.xlane.f32.xlu0 %v26
  %v28 = vpop.xlane.xlu0 %27
  %v29 = vmax.f32 %v28, 1e-24
  %v30 = vrsqrt.pop %v29
  %v31 = vmul.f32 %v15, %v15
  %v32 = vsel %vm25, %v31, 0.0
  %33 = vadd.xlane.f32.xlu0 %v32
  %v34 = vpop.xlane.xlu0 %33
  %v35 = vmax.f32 %v34, 1e-24
  %v36 = vrsqrt.pop %v35
  %v37 = vmul.f32 %v14, %v30
  %v38 = vmul.f32 %v37, %v15
  %v39 = vsel %vm25, %v38, 0.0
  %40 = vadd.xlane.f32.xlu0 %v39
  %v41 = vpop.xlane.xlu0 %40
  %v42 = vmul.f32 %v41, %v36
  %v44 = vcombine.high %v37, %v37
  %v46 = vunpack.c.l.s4 1966171168
  %v47 = vunpack.c.0.s8 %v46
  %v48 = vlaneseq
  %v49 = vshrl.u32 %v48, 7
  %v50 = vsub.s32 %v47, %v49
  %v51 = vrot.slane %v37, %v50
  %v53 = vunpack.c.l.s4 1966171168
  %v54 = vunpack.c.0.s8 %v53
  %v55 = vlaneseq
  %v56 = vshrl.u32 %v55, 7
  %v57 = vsub.s32 %v54, %v56
  %v58 = vrot.slane %v44, %v57
  %v59 = vcombine.high %v51, %v51
  %v60 = vcombine.high %v58, %v58
  %v62 = vunpack.c.l.s4 1966171168
  %v63 = vunpack.c.0.s8 %v62
  %v64 = vlaneseq
  %v65 = vshrl.u32 %v64, 7
  %v66 = vsub.s32 %v63, %v65
  %v67 = vrot.slane %v51, %v66
  %v69 = vunpack.c.l.s4 1966171168
  %v70 = vunpack.c.0.s8 %v69
  %v71 = vlaneseq
  %v72 = vshrl.u32 %v71, 7
  %v73 = vsub.s32 %v70, %v72
  %v74 = vrot.slane %v58, %v73
  %v76 = vunpack.c.l.s4 1966171168
  %v77 = vunpack.c.0.s8 %v76
  %v78 = vlaneseq
  %v79 = vshrl.u32 %v78, 7
  %v80 = vsub.s32 %v77, %v79
  %v81 = vrot.slane %v59, %v80
  %v83 = vunpack.c.l.s4 1966171168
  %v84 = vunpack.c.0.s8 %v83
  %v85 = vlaneseq
  %v86 = vshrl.u32 %v85, 7
  %v87 = vsub.s32 %v84, %v86
  %v88 = vrot.slane %v60, %v87
  %v89 = vcombine.high %v67, %v67
  %v90 = vcombine.high %v74, %v74
  %v91 = vcombine.high %v81, %v81
  %v92 = vcombine.high %v88, %v88
  %v93 = vlaneseq
  %v94 = vshrl.u32 %v93, 7
  %v95 = vsub.s32 0, %v94
  %v96 = vrot.slane %v67, %v95
  %v97 = vlaneseq
  %v98 = vshrl.u32 %v97, 7
  %v99 = vsub.s32 0, %v98
  %v100 = vrot.slane %v81, %v99
  %v101 = vlaneseq
  %v102 = vshrl.u32 %v101, 7
  %v103 = vsub.s32 0, %v102
  %v104 = vrot.slane %v89, %v103
  %v105 = vlaneseq
  %v106 = vshrl.u32 %v105, 7
  %v107 = vsub.s32 0, %v106
  %v108 = vrot.slane %v91, %v107
  %v109 = vlaneseq
  %v110 = vshrl.u32 %v109, 7
  %v111 = vsub.s32 0, %v110
  %v112 = vrot.slane %v74, %v111
  %v113 = vlaneseq
  %v114 = vshrl.u32 %v113, 7
  %v115 = vsub.s32 0, %v114
  %v116 = vrot.slane %v88, %v115
  %v117 = vlaneseq
  %v118 = vshrl.u32 %v117, 7
  %v119 = vsub.s32 0, %v118
  %v120 = vrot.slane %v90, %v119
  %v121 = vlaneseq
  %v122 = vshrl.u32 %v121, 7
  %v123 = vsub.s32 0, %v122
  %v124 = vrot.slane %v92, %v123
  %v133 = vmul.f32 %v96, %v16
  %v134 = vmul.f32 %v100, %v17
  %v135 = vmul.f32 %v104, %v18
  %v136 = vmul.f32 %v108, %v19
  %v137 = vmul.f32 %v112, %v20
  %v138 = vmul.f32 %v116, %v21
  %v139 = vmul.f32 %v120, %v22
  %v140 = vmul.f32 %v124, %v23
  %vm141 = vcmask 260096
  %v142 = vsel %vm141, %v133, 0.0
  %143 = vadd.xlane.f32.xlu0 %v142
  %v144 = vpop.xlane.xlu0 %143
  %v145 = vsel %vm141, %v134, 0.0
  %146 = vadd.xlane.f32.xlu0 %v145
  %v147 = vpop.xlane.xlu0 %146
  %v148 = vsel %vm141, %v135, 0.0
  %149 = vadd.xlane.f32.xlu0 %v148
  %v150 = vpop.xlane.xlu0 %149
  %v151 = vsel %vm141, %v136, 0.0
  %152 = vadd.xlane.f32.xlu0 %v151
  %v153 = vpop.xlane.xlu0 %152
  %v154 = vsel %vm141, %v137, 0.0
  %155 = vadd.xlane.f32.xlu0 %v154
  %v156 = vpop.xlane.xlu0 %155
  %v157 = vsel %vm141, %v138, 0.0
  %158 = vadd.xlane.f32.xlu0 %v157
  %v159 = vpop.xlane.xlu0 %158
  %v160 = vsel %vm141, %v139, 0.0
  %161 = vadd.xlane.f32.xlu0 %v160
  %v162 = vpop.xlane.xlu0 %161
  %v163 = vsel %vm141, %v140, 0.0
  %164 = vadd.xlane.f32.xlu0 %v163
  %v165 = vpop.xlane.xlu0 %164
  %v166 = vmul.f32 %v16, %v16
  %v167 = vmul.f32 %v17, %v17
  %v168 = vmul.f32 %v18, %v18
  %v169 = vmul.f32 %v19, %v19
  %v170 = vmul.f32 %v20, %v20
  %v171 = vmul.f32 %v21, %v21
  %v172 = vmul.f32 %v22, %v22
  %v173 = vmul.f32 %v23, %v23
  %v174 = vsel %vm141, %v166, 0.0
  %175 = vadd.xlane.f32.xlu0 %v174
  %v176 = vpop.xlane.xlu0 %175
  %v177 = vsel %vm141, %v167, 0.0
  %178 = vadd.xlane.f32.xlu0 %v177
  %v179 = vpop.xlane.xlu0 %178
  %v180 = vsel %vm141, %v168, 0.0
  %181 = vadd.xlane.f32.xlu0 %v180
  %v182 = vpop.xlane.xlu0 %181
  %v183 = vsel %vm141, %v169, 0.0
  %184 = vadd.xlane.f32.xlu0 %v183
  %v185 = vpop.xlane.xlu0 %184
  %v186 = vsel %vm141, %v170, 0.0
  %187 = vadd.xlane.f32.xlu0 %v186
  %v188 = vpop.xlane.xlu0 %187
  %v189 = vsel %vm141, %v171, 0.0
  %190 = vadd.xlane.f32.xlu0 %v189
  %v191 = vpop.xlane.xlu0 %190
  %v192 = vsel %vm141, %v172, 0.0
  %193 = vadd.xlane.f32.xlu0 %v192
  %v194 = vpop.xlane.xlu0 %193
  %v195 = vsel %vm141, %v173, 0.0
  %196 = vadd.xlane.f32.xlu0 %v195
  %v197 = vpop.xlane.xlu0 %196
  %v198 = vmax.f32 %v176, 1e-24
  %v199 = vmax.f32 %v179, 1e-24
  %v200 = vmax.f32 %v182, 1e-24
  %v201 = vmax.f32 %v185, 1e-24
  %v202 = vmax.f32 %v188, 1e-24
  %v203 = vmax.f32 %v191, 1e-24
  %v204 = vmax.f32 %v194, 1e-24
  %v205 = vmax.f32 %v197, 1e-24
  %v206 = vrsqrt.pop %v198
  %v207 = vrsqrt.pop %v199
  %v208 = vrsqrt.pop %v200
  %v209 = vrsqrt.pop %v201
  %v210 = vrsqrt.pop %v202
  %v211 = vrsqrt.pop %v203
  %v212 = vrsqrt.pop %v204
  %v213 = vrsqrt.pop %v205
  %v214 = vmul.f32 %v144, %v206
  %v215 = vmul.f32 %v147, %v207
  %v216 = vmul.f32 %v150, %v208
  %v217 = vmul.f32 %v153, %v209
  %v218 = vmul.f32 %v156, %v210
  %v219 = vmul.f32 %v159, %v211
  %v220 = vmul.f32 %v162, %v212
  %v221 = vmul.f32 %v165, %v213
  %v222 = vmul.f32 %v42, 20.0
  %v223 = vmul.f32 %v214, 20.0
  %v224 = vmul.f32 %v215, 20.0
  %v225 = vmul.f32 %v216, 20.0
  %v226 = vmul.f32 %v217, 20.0
  %v227 = vmul.f32 %v218, 20.0
  %v228 = vmul.f32 %v219, 20.0
  %v229 = vmul.f32 %v220, 20.0
  %v230 = vmul.f32 %v221, 20.0
  %v239 = vlaneseq
  %v240 = vand.u32 %v239, 127
  %v241 = vlaneseq
  %v242 = vshrl.u32 %v241, 7
  %v243 = vsub.s32 %v240, %v242
  %v244 = vrot.slane %v223, %v243
  %v245 = vlaneseq
  %v246 = vshrl.u32 %v245, 7
  %v247 = vsub.s32 %v240, %v246
  %v248 = vrot.slane %v224, %v247
  %v249 = vlaneseq
  %v250 = vshrl.u32 %v249, 7
  %v251 = vsub.s32 %v240, %v250
  %v252 = vrot.slane %v225, %v251
  %v253 = vlaneseq
  %v254 = vshrl.u32 %v253, 7
  %v255 = vsub.s32 %v240, %v254
  %v256 = vrot.slane %v226, %v255
  %v257 = vlaneseq
  %v258 = vshrl.u32 %v257, 7
  %v259 = vsub.s32 %v240, %v258
  %v260 = vrot.slane %v227, %v259
  %v261 = vlaneseq
  %v262 = vshrl.u32 %v261, 7
  %v263 = vsub.s32 %v240, %v262
  %v264 = vrot.slane %v228, %v263
  %v265 = vlaneseq
  %v266 = vshrl.u32 %v265, 7
  %v267 = vsub.s32 %v240, %v266
  %v268 = vrot.slane %v229, %v267
  %v269 = vlaneseq
  %v270 = vshrl.u32 %v269, 7
  %v271 = vsub.s32 %v240, %v270
  %v272 = vrot.slane %v230, %v271
  %vm273 = vcmask 1041409
  %v274 = vsel %vm273, %v248, %v244
  %vm275 = vcmask 1042434
  %v276 = vsel %vm275, %v252, %v274
  %vm277 = vcmask 1043459
  %v278 = vsel %vm277, %v256, %v276
  %vm279 = vcmask 1044484
  %v280 = vsel %vm279, %v260, %v278
  %vm281 = vcmask 1045509
  %v282 = vsel %vm281, %v264, %v280
  %vm283 = vcmask 1046534
  %v284 = vsel %vm283, %v268, %v282
  %vm285 = vcmask 1047559
  %v286 = vsel %vm285, %v272, %v284
  %vm288 = vcmask 56320
  %v289 = vsel %vm288, %v286, -inf
  %290 = vmax.xlane.f32.xlu0 %v289
  %v291 = vpop.xlane.xlu0 %290
  %v292 = vmax.f32 %v222, %v291
  %v293 = vsub.f32 %v222, %v292
  %v294 = vmul.f32 %v293, 1.442695
  %v295 = vpow.pop %v294
  %v297 = vlaneseq
  %v298 = vshrl.u32 %v297, 7
  %v299 = vsub.s32 0, %v298
  %v300 = vrot.slane %v292, %v299
  %v301 = vlaneseq
  %v302 = vshrl.u32 %v301, 7
  %v303 = vsub.s32 1, %v302
  %v304 = vrot.slane %v292, %v303
  %v305 = vlaneseq
  %v306 = vshrl.u32 %v305, 7
  %v307 = vsub.s32 2, %v306
  %v308 = vrot.slane %v292, %v307
  %v309 = vlaneseq
  %v310 = vshrl.u32 %v309, 7
  %v311 = vsub.s32 3, %v310
  %v312 = vrot.slane %v292, %v311
  %v313 = vlaneseq
  %v314 = vshrl.u32 %v313, 7
  %v315 = vsub.s32 4, %v314
  %v316 = vrot.slane %v292, %v315
  %v317 = vlaneseq
  %v318 = vshrl.u32 %v317, 7
  %v319 = vsub.s32 5, %v318
  %v320 = vrot.slane %v292, %v319
  %v321 = vlaneseq
  %v322 = vshrl.u32 %v321, 7
  %v323 = vsub.s32 6, %v322
  %v324 = vrot.slane %v292, %v323
  %v325 = vlaneseq
  %v326 = vshrl.u32 %v325, 7
  %v327 = vsub.s32 7, %v326
  %v328 = vrot.slane %v292, %v327
  %v337 = vsub.f32 %v223, %v300
  %v338 = vsub.f32 %v224, %v304
  %v339 = vsub.f32 %v225, %v308
  %v340 = vsub.f32 %v226, %v312
  %v341 = vsub.f32 %v227, %v316
  %v342 = vsub.f32 %v228, %v320
  %v343 = vsub.f32 %v229, %v324
  %v344 = vsub.f32 %v230, %v328
  %v345 = vmul.f32 %v337, 1.442695
  %v346 = vpow.pop %v345
  %v347 = vmul.f32 %v338, 1.442695
  %v348 = vpow.pop %v347
  %v349 = vmul.f32 %v339, 1.442695
  %v350 = vpow.pop %v349
  %v351 = vmul.f32 %v340, 1.442695
  %v352 = vpow.pop %v351
  %v353 = vmul.f32 %v341, 1.442695
  %v354 = vpow.pop %v353
  %v355 = vmul.f32 %v342, 1.442695
  %v356 = vpow.pop %v355
  %v357 = vmul.f32 %v343, 1.442695
  %v358 = vpow.pop %v357
  %v359 = vmul.f32 %v344, 1.442695
  %v360 = vpow.pop %v359
  %369 = vset.pattern.permute.xlu0 0
  %370 = vperm.xlu0 %369, %v346
  %v371 = vpop.permute.xlu0 %370
  %372 = vset.pattern.permute.xlu0 0
  %373 = vperm.xlu0 %372, %v348
  %v374 = vpop.permute.xlu0 %373
  %375 = vset.pattern.permute.xlu0 0
  %376 = vperm.xlu0 %375, %v350
  %v377 = vpop.permute.xlu0 %376
  %378 = vset.pattern.permute.xlu0 0
  %379 = vperm.xlu0 %378, %v352
  %v380 = vpop.permute.xlu0 %379
  %381 = vset.pattern.permute.xlu0 0
  %382 = vperm.xlu0 %381, %v354
  %v383 = vpop.permute.xlu0 %382
  %384 = vset.pattern.permute.xlu0 0
  %385 = vperm.xlu0 %384, %v356
  %v386 = vpop.permute.xlu0 %385
  %387 = vset.pattern.permute.xlu0 0
  %388 = vperm.xlu0 %387, %v358
  %v389 = vpop.permute.xlu0 %388
  %390 = vset.pattern.permute.xlu0 0
  %391 = vperm.xlu0 %390, %v360
  %v392 = vpop.permute.xlu0 %391
  %v393 = vlaneseq
  %v394 = vshrl.u32 %v393, 7
  %v395 = vsub.s32 %v240, %v394
  %v396 = vrot.slane %v371, %v395
  %v397 = vlaneseq
  %v398 = vshrl.u32 %v397, 7
  %v399 = vsub.s32 %v240, %v398
  %v400 = vrot.slane %v374, %v399
  %v401 = vlaneseq
  %v402 = vshrl.u32 %v401, 7
  %v403 = vsub.s32 %v240, %v402
  %v404 = vrot.slane %v377, %v403
  %v405 = vlaneseq
  %v406 = vshrl.u32 %v405, 7
  %v407 = vsub.s32 %v240, %v406
  %v408 = vrot.slane %v380, %v407
  %v409 = vlaneseq
  %v410 = vshrl.u32 %v409, 7
  %v411 = vsub.s32 %v240, %v410
  %v412 = vrot.slane %v383, %v411
  %v413 = vlaneseq
  %v414 = vshrl.u32 %v413, 7
  %v415 = vsub.s32 %v240, %v414
  %v416 = vrot.slane %v386, %v415
  %v417 = vlaneseq
  %v418 = vshrl.u32 %v417, 7
  %v419 = vsub.s32 %v240, %v418
  %v420 = vrot.slane %v389, %v419
  %v421 = vlaneseq
  %v422 = vshrl.u32 %v421, 7
  %v423 = vsub.s32 %v240, %v422
  %v424 = vrot.slane %v392, %v423
  %v425 = vsel %vm273, %v400, %v396
  %v426 = vsel %vm275, %v404, %v425
  %v427 = vsel %vm277, %v408, %v426
  %v428 = vsel %vm279, %v412, %v427
  %v429 = vsel %vm281, %v416, %v428
  %v430 = vsel %vm283, %v420, %v429
  %v431 = vsel %vm285, %v424, %v430
  %v433 = vsel %vm288, %v431, 0.0
  %434 = vadd.xlane.f32.xlu0 %v433
  %v435 = vpop.xlane.xlu0 %434
  %v436 = vadd.f32 %v295, %v435
  %v437 = vlog2.pop %v436
  %v438 = vmul.f32 %v437, 0.6931472
  %v439 = vsub.f32 %v293, %v438
  %v440 = vsub.f32 0.0, %v439
  %vm441 = vcmask 7168
  %442 = vst.msk [vmem:[%s3] sm:$0xff] %vm441, %v440
  // Predicated region
  $region14: #{tpu_custom_call.1} parent=0 // pred_check
    _
  $region15: #{tpu_custom_call.1} parent=0 // pred_check_branch
    %444 = sbr.rel (0) target = $region17
  $region16: #{tpu_custom_call.1} parent=0 // pred_region
    _
  $region17: #{tpu_custom_call.1} parent=0 // pred_fallthru
    _
  // Predicated region
  $region18: #{tpu_custom_call.1} parent=0 // pred_check
    _
  $region19: #{tpu_custom_call.1} parent=0 // pred_check_branch
    %446 = sbr.rel (0) target = $region21
  $region20: #{tpu_custom_call.1} parent=0 // pred_region
    _
  $region21: #{tpu_custom_call.1} parent=0 // pred_fallthru
    _

</llo_original>
